<compile_context>
chip_gen: v7x
topology: tpu7x:2x2x1
jax: 0.10.0
libtpu: 0.0.40
codegen_flags: <defaults>
</compile_context>

<pallas_src>
import functools

import jax
import jax.numpy as jnp
from jax.experimental import pallas as pl
from jax.experimental.pallas import tpu as pltpu

_LANE = 128


def _round_up(a, b):
    return -(-a // b) * b


def _cdiv(a, b):
    return -(-a // b)


def _hw_params():
    """Generation-aware (fused-slab budget, vmem_limit cap, is_v7x)."""
    try:
        kind = jax.devices()[0].device_kind.lower()
    except Exception:
        kind = ""
    if "v7" in kind:
        # v7x: 64 MiB physical VMEM per TC, ~3.2 TB/s HBM. Keep the fused slab
        # ~11 MiB so 4x (in+out, double buffered) stays comfortably < 50 MiB.
        return 11 << 20, 50 << 20, True
    if "v5" in kind or "v6" in kind:
        # v5e/v6e: 128 MiB physical VMEM; the scoped default is far smaller,
        # so an explicit (large) vmem_limit_bytes is what keeps big tiles legal.
        return 20 << 20, 100 << 20, False
    # Unknown generation / interpreter: conservative.
    return 8 << 20, 48 << 20, False


# --------------------------------------------------------------------------
# Fused single-pass kernel: pool + gate + scale on one (Nb, C, S) slab.
# The lane dim is the FULL spatial extent S (may be non-multiple of 128); the
# compiler masks the tail, so no host-side padding/slicing is needed.
# --------------------------------------------------------------------------
def _se_fused_kernel(inv_s, x_ref, w1t_ref, b1_ref, w2t_ref, b2_ref, o_ref):
    x = x_ref[...]                                                 # (Nb, C, S) native dtype
    pooled = jnp.sum(x, axis=-1, dtype=jnp.float32) * inv_s        # (Nb, C) f32
    # Excitation: 1x1x1 convs == tiny channel-mixing matmuls (hidden under DMA).
    h = jnp.dot(pooled, w1t_ref[...], preferred_element_type=jnp.float32,
                precision=jax.lax.Precision.HIGHEST) + b1_ref[...]  # (Nb, Cr)
    h = jnp.maximum(h, 0.0)
    g = jnp.dot(h, w2t_ref[...], preferred_element_type=jnp.float32,
                precision=jax.lax.Precision.HIGHEST) + b2_ref[...]  # (Nb, C)
    g = jax.nn.sigmoid(g)
    o_ref[...] = x * g.astype(o_ref.dtype)[:, :, None]


# --------------------------------------------------------------------------
# Tiled path, pass 1: accumulate per-channel sums over lane-dense S tiles.
# The ragged last tile (when S % TS != 0) is masked in-kernel: out-of-bounds
# lanes of an edge block are NOT guaranteed to be zero.  At the last S tile the
# sums are turned into the sigmoid gate (output ref doubles as the f32
# accumulator, resident across the "arbitrary" S axis).
# --------------------------------------------------------------------------
def _pool_gate_kernel(inv_s, s_total, ts, x_ref, w1t_ref, b1_ref, w2t_ref,
                      b2_ref, g_ref):
    s = pl.program_id(1)

    @pl.when(s == 0)
    def _():
        g_ref[...] = jnp.zeros_like(g_ref)

    x = x_ref[...]                                                  # (Nb, C, TS)
    if s_total % ts != 0:
        # Zero the lanes past the true spatial extent before accumulating.
        lane = jax.lax.broadcasted_iota(jnp.int32, x.shape, dimension=2)
        rem = s_total - s * ts
        x = jnp.where(lane < rem, x, jnp.zeros_like(x))
    g_ref[...] += jnp.sum(x, axis=-1, dtype=jnp.float32)            # (Nb, C)

    @pl.when(s == pl.num_programs(1) - 1)
    def _():
        pooled = g_ref[...] * inv_s                                  # (Nb, C)
        h = jnp.dot(pooled, w1t_ref[...], preferred_element_type=jnp.float32,
                    precision=jax.lax.Precision.HIGHEST) + b1_ref[...]
        h = jnp.maximum(h, 0.0)
        g = jnp.dot(h, w2t_ref[...], preferred_element_type=jnp.float32,
                    precision=jax.lax.Precision.HIGHEST) + b2_ref[...]
        g_ref[...] = jax.nn.sigmoid(g)


# --------------------------------------------------------------------------
# Tiled path, pass 2: elementwise rescale of x by the per-(n, c) gate.
# Edge S tiles need no masking: out-of-bounds output lanes are clipped.
# --------------------------------------------------------------------------
def _scale_kernel(x_ref, g_ref, o_ref):
    g = g_ref[...].astype(o_ref.dtype)[:, :, None]                   # (Nb, C, 1)
    o_ref[...] = x_ref[...] * g


# --------------------------------------------------------------------------
# Wrapper
# --------------------------------------------------------------------------
def se_block(x, w1, b1, w2, b2, *, max_tile_bytes=None):
    """x: (N, C, D, H, W); w1: (Cr, C); b1: (Cr, 1); w2: (C, Cr); b2: (C, 1)."""
    N, C, D, H, W = x.shape
    Cr = w1.shape[0]
    S = D * H * W
    itemsize = x.dtype.itemsize
    inv_s = 1.0 / float(S)                     # divide by the TRUE spatial size

    slab_budget, vmem_cap, is_v7 = _hw_params()
    if max_tile_bytes is not None:
        slab_budget = int(max_tile_bytes)

    # VMEM byte accounting with hardware-padded tile extents.
    sub_pack = max(1, 32 // itemsize)          # 8 f32 / 16 bf16 / 32 int8
    c_pad = _round_up(C, sub_pack)
    sp_lane = _round_up(S, _LANE)
    row_bytes = c_pad * sp_lane * itemsize     # one batch element, lane-padded

    # Pre-transpose the tiny excitation weights (no in-kernel transposes).
    w1t = jnp.transpose(w1)                    # (C, Cr)
    w2t = jnp.transpose(w2)                    # (Cr, C)
    b1r = jnp.reshape(b1, (1, Cr))
    b2r = jnp.reshape(b2, (1, C))

    x3 = x.reshape(N, C, S)                    # free reshape; NO host-side pad.

    # ---------------- Fused single-pass path (preferred) --------------------
    # Largest divisor-of-N batch block whose slab fits the budget; on v7x keep
    # num_b >= 2 so the "parallel" batch axis feeds both TensorCores.
    nb_cap = N
    if is_v7 and N >= 2:
        nb_cap = max(1, N // 2)
    Nb = 0
    for cand in range(nb_cap, 0, -1):
        if N % cand == 0 and cand * row_bytes <= slab_budget:
            Nb = cand
            break

    if Nb > 0:
        num_b = N // Nb
        slab = Nb * row_bytes
        vmem_limit = int(min(max(4 * slab + (4 << 20), 16 << 20), vmem_cap))
        out = pl.pallas_call(
            functools.partial(_se_fused_kernel, inv_s),
            out_shape=jax.ShapeDtypeStruct((N, C, S), x.dtype),
            grid_spec=pltpu.PrefetchScalarGridSpec(
                num_scalar_prefetch=0,
                grid=(num_b,),
                in_specs=[
                    pl.BlockSpec((Nb, C, S), lambda b: (b, 0, 0)),
                    pl.BlockSpec((C, Cr), lambda b: (0, 0)),
                    pl.BlockSpec((1, Cr), lambda b: (0, 0)),
                    pl.BlockSpec((Cr, C), lambda b: (0, 0)),
                    pl.BlockSpec((1, C), lambda b: (0, 0)),
                ],
                out_specs=pl.BlockSpec((Nb, C, S), lambda b: (b, 0, 0)),
            ),
            compiler_params=pltpu.CompilerParams(
                dimension_semantics=("parallel",),
                vmem_limit_bytes=vmem_limit,
            ),
        )(x3, w1t, b1r, w2t, b2r)
        return out.reshape(N, C, D, H, W)

    # ---------------- Tiled pool-then-scale path (fallback) -----------------
    # Batch block: full N (always a legal (Nb, C) gate block) or a multiple of
    # 8 when N is large enough (keeps num_b >= 2 for v7x megacore sharding).
    Nb = 8 if (N >= 16 and N % 8 == 0) else N
    num_b = N // Nb

    ts = (slab_budget // (Nb * c_pad * itemsize)) // _LANE * _LANE
    TS = int(max(_LANE, min(ts if ts > 0 else _LANE, sp_lane)))
    num_s = _cdiv(S, TS)
    tile = Nb * c_pad * TS * itemsize
    vmem_limit = int(min(max(4 * tile + (4 << 20), 16 << 20), vmem_cap))

    # Pass 1: pooled sums -> gate (N, C) in f32. Reduction (S) axis last.
    gate = pl.pallas_call(
        functools.partial(_pool_gate_kernel, inv_s, S, TS),
        out_shape=jax.ShapeDtypeStruct((N, C), jnp.float32),
        grid_spec=pltpu.PrefetchScalarGridSpec(
            num_scalar_prefetch=0,
            grid=(num_b, num_s),
            in_specs=[
                pl.BlockSpec((Nb, C, TS), lambda b, s: (b, 0, s)),
                pl.BlockSpec((C, Cr), lambda b, s: (0, 0)),
                pl.BlockSpec((1, Cr), lambda b, s: (0, 0)),
                pl.BlockSpec((Cr, C), lambda b, s: (0, 0)),
                pl.BlockSpec((1, C), lambda b, s: (0, 0)),
            ],
            out_specs=pl.BlockSpec((Nb, C), lambda b, s: (b, 0)),
        ),
        compiler_params=pltpu.CompilerParams(
            dimension_semantics=("parallel", "arbitrary"),
            vmem_limit_bytes=vmem_limit,
        ),
    )(x3, w1t, b1r, w2t, b2r)

    # Pass 2: elementwise scale; both grid axes parallel (megacore-shardable).
    out = pl.pallas_call(
        _scale_kernel,
        out_shape=jax.ShapeDtypeStruct((N, C, S), x.dtype),
        grid_spec=pltpu.PrefetchScalarGridSpec(
            num_scalar_prefetch=0,
            grid=(num_b, num_s),
            in_specs=[
                pl.BlockSpec((Nb, C, TS), lambda b, s: (b, 0, s)),
                pl.BlockSpec((Nb, C), lambda b, s: (b, 0)),
            ],
            out_specs=pl.BlockSpec((Nb, C, TS), lambda b, s: (b, 0, s)),
        ),
        compiler_params=pltpu.CompilerParams(
            dimension_semantics=("parallel", "parallel"),
            vmem_limit_bytes=vmem_limit,
        ),
    )(x3, gate)
    return out.reshape(N, C, D, H, W)


# --------------------------------------------------------------------------
# Pure-JAX reference mirroring the PyTorch module.
# --------------------------------------------------------------------------
def se_block_ref(x, w1, b1, w2, b2):
    pooled = jnp.mean(x, axis=(2, 3, 4))                      # (N, C)
    h = jnp.maximum(pooled @ w1.T + b1[:, 0], 0.0)            # (N, Cr)
    g = jax.nn.sigmoid(h @ w2.T + b2[:, 0])                   # (N, C)
    return x * g[:, :, None, None, None]


if __name__ == "__main__":
    base_key = jax.random.PRNGKey(0)

    def run_case(case_idx, N, C, D, H, W, ratio, **kw):
        Cr = max(C // ratio, 1)
        key = jax.random.fold_in(base_key, case_idx)
        kx, kw1, kb1, kw2, kb2 = jax.random.split(key, 5)
        x = jax.random.normal(kx, (N, C, D, H, W), dtype=jnp.float32)
        w1 = 0.1 * jax.random.normal(kw1, (Cr, C), dtype=jnp.float32)
        b1 = 0.1 * jax.random.normal(kb1, (Cr, 1), dtype=jnp.float32)
        w2 = 0.1 * jax.random.normal(kw2, (C, Cr), dtype=jnp.float32)
        b2 = 0.1 * jax.random.normal(kb2, (C, 1), dtype=jnp.float32)

        out = jax.block_until_ready(se_block(x, w1, b1, w2, b2, **kw))
        ref = se_block_ref(x, w1, b1, w2, b2)
        assert out.shape == x.shape and out.dtype == x.dtype
        assert jnp.allclose(out, ref, atol=1e-5, rtol=1e-5), (
            f"case {case_idx}: mismatch vs reference")

    # Module config: in_ch=8, ratio=4 -> reduced channels = 2.
    # 1) fused single-pass path, lane-aligned S = 512.
    run_case(0, 2, 8, 8, 8, 8, 4)
    # 2) fused single-pass path with non-multiple-of-128 S = 210
    #    (no host pad; masked-tail vst handled by the compiler).
    run_case(1, 2, 8, 5, 6, 7, 4)
    # 3) tiled pool-then-scale path, S divisible by TS (forced via tiny budget).
    run_case(2, 2, 8, 16, 16, 16, 4, max_tile_bytes=16 * 1024)
    # 4) tiled path with a ragged last S tile (in-kernel mask in the pooling).
    run_case(3, 2, 8, 9, 10, 11, 4, max_tile_bytes=16 * 1024)

    print("KERNEL_OK")
</pallas_src>

<mosaic_0001>
module attributes {stable_mosaic.version = 11 : i64} {
  func.func @_se_fused_kernel(%arg0: i32, %arg1: memref<2x8x512xf32, #tpu.memory_space<vmem>>, %arg2: memref<8x2xf32, #tpu.memory_space<vmem>>, %arg3: memref<1x2xf32, #tpu.memory_space<vmem>>, %arg4: memref<2x8xf32, #tpu.memory_space<vmem>>, %arg5: memref<1x8xf32, #tpu.memory_space<vmem>>, %arg6: memref<2x8x512xf32, #tpu.memory_space<vmem>>) attributes {dimension_semantics = [#tpu.dimension_semantics<parallel>], iteration_bounds = array<i64: 1>, scalar_prefetch = 0 : i64, scratch_operands = 0 : i64, tpu.core_type = #tpu.core_type<tc>, window_params = [{transform_indices = @transform_0, window_bounds = array<i64: 2, 8, 512>}, {pipeline_mode = #tpu.pipeline_mode<synchronous>, transform_indices = @transform_1, window_bounds = array<i64: 8, 2>}, {pipeline_mode = #tpu.pipeline_mode<synchronous>, transform_indices = @transform_2, window_bounds = array<i64: 1, 2>}, {pipeline_mode = #tpu.pipeline_mode<synchronous>, transform_indices = @transform_3, window_bounds = array<i64: 2, 8>}, {pipeline_mode = #tpu.pipeline_mode<synchronous>, transform_indices = @transform_4, window_bounds = array<i64: 1, 8>}, {transform_indices = @transform_5, window_bounds = array<i64: 2, 8, 512>}]} {
    %c0 = arith.constant 0 : index
    %c0_0 = arith.constant 0 : index
    %c0_1 = arith.constant 0 : index
    %0 = vector.load %arg1[%c0, %c0_0, %c0_1] : memref<2x8x512xf32, #tpu.memory_space<vmem>>, vector<2x8x512xf32>
    %cst = arith.constant dense<0.000000e+00> : vector<2x8xf32>
    %1 = vector.multi_reduction <add>, %0, %cst [2] : vector<2x8x512xf32> to vector<2x8xf32>
    %cst_2 = arith.constant 0.001953125 : f32
    %2 = vector.broadcast %cst_2 : f32 to vector<2x8xf32>
    %3 = arith.mulf %1, %2 : vector<2x8xf32>
    %c0_3 = arith.constant 0 : index
    %c0_4 = arith.constant 0 : index
    %4 = vector.load %arg2[%c0_3, %c0_4] : memref<8x2xf32, #tpu.memory_space<vmem>>, vector<8x2xf32>
    %cst_5 = arith.constant dense<0.000000e+00> : vector<2x2xf32>
    %5 = tpu.matmul %3, %4, %cst_5 {dimension_numbers = #tpu.dot_dimension_numbers<[1], [0], [0], [1], [0, 0, 1, 1], [], []>, precision = #tpu.contract_precision<fp32>} : vector<2x8xf32>, vector<8x2xf32>, vector<2x2xf32> -> vector<2x2xf32>
    %c0_6 = arith.constant 0 : index
    %c0_7 = arith.constant 0 : index
    %6 = vector.load %arg3[%c0_6, %c0_7] : memref<1x2xf32, #tpu.memory_space<vmem>>, vector<1x2xf32>
    %7 = vector.broadcast %6 : vector<1x2xf32> to vector<2x2xf32>
    %8 = arith.addf %5, %7 : vector<2x2xf32>
    %cst_8 = arith.constant 0.000000e+00 : f32
    %9 = vector.broadcast %cst_8 : f32 to vector<2x2xf32>
    %10 = arith.maximumf %8, %9 : vector<2x2xf32>
    %c0_9 = arith.constant 0 : index
    %c0_10 = arith.constant 0 : index
    %11 = vector.load %arg4[%c0_9, %c0_10] : memref<2x8xf32, #tpu.memory_space<vmem>>, vector<2x8xf32>
    %cst_11 = arith.constant dense<0.000000e+00> : vector<2x8xf32>
    %12 = tpu.matmul %10, %11, %cst_11 {dimension_numbers = #tpu.dot_dimension_numbers<[1], [0], [0], [1], [0, 0, 1, 1], [], []>, precision = #tpu.contract_precision<fp32>} : vector<2x2xf32>, vector<2x8xf32>, vector<2x8xf32> -> vector<2x8xf32>
    %c0_12 = arith.constant 0 : index
    %c0_13 = arith.constant 0 : index
    %13 = vector.load %arg5[%c0_12, %c0_13] : memref<1x8xf32, #tpu.memory_space<vmem>>, vector<1x8xf32>
    %14 = vector.broadcast %13 : vector<1x8xf32> to vector<2x8xf32>
    %15 = arith.addf %12, %14 : vector<2x8xf32>
    %16 = arith.negf %15 : vector<2x8xf32>
    %17 = math.exp %16 : vector<2x8xf32>
    %cst_14 = arith.constant 1.000000e+00 : f32
    %18 = vector.broadcast %cst_14 : f32 to vector<2x8xf32>
    %19 = arith.addf %18, %17 : vector<2x8xf32>
    %20 = arith.divf %18, %19 : vector<2x8xf32>
    %21 = vector.shape_cast %20 : vector<2x8xf32> to vector<2x8x1xf32>
    %22 = vector.broadcast %21 : vector<2x8x1xf32> to vector<2x8x512xf32>
    %23 = arith.mulf %0, %22 : vector<2x8x512xf32>
    %c0_15 = arith.constant 0 : index
    %c0_16 = arith.constant 0 : index
    %c0_17 = arith.constant 0 : index
    %24 = vector.load %arg6[%c0_15, %c0_16, %c0_17] : memref<2x8x512xf32, #tpu.memory_space<vmem>>, vector<2x8x512xf32>
    tpu.vector_store %arg6[%c0_15, %c0_16, %c0_17], %23 {strides = array<i32>} : memref<2x8x512xf32, #tpu.memory_space<vmem>>, vector<2x8x512xf32>,
    return
  }
  func.func @transform_0(%arg0: i32) -> (i32, i32, i32) {
    %c0_i32 = arith.constant 0 : i32
    %c0_i32_0 = arith.constant 0 : i32
    %c0_i32_1 = arith.constant 0 : i32
    return %arg0, %c0_i32, %c0_i32_0 : i32, i32, i32
  }
  func.func @transform_1(%arg0: i32) -> (i32, i32) {
    %c0_i32 = arith.constant 0 : i32
    %c0_i32_0 = arith.constant 0 : i32
    %c0_i32_1 = arith.constant 0 : i32
    return %c0_i32, %c0_i32_0 : i32, i32
  }
  func.func @transform_2(%arg0: i32) -> (i32, i32) {
    %c0_i32 = arith.constant 0 : i32
    %c0_i32_0 = arith.constant 0 : i32
    %c0_i32_1 = arith.constant 0 : i32
    return %c0_i32, %c0_i32_0 : i32, i32
  }
  func.func @transform_3(%arg0: i32) -> (i32, i32) {
    %c0_i32 = arith.constant 0 : i32
    %c0_i32_0 = arith.constant 0 : i32
    %c0_i32_1 = arith.constant 0 : i32
    return %c0_i32, %c0_i32_0 : i32, i32
  }
  func.func @transform_4(%arg0: i32) -> (i32, i32) {
    %c0_i32 = arith.constant 0 : i32
    %c0_i32_0 = arith.constant 0 : i32
    %c0_i32_1 = arith.constant 0 : i32
    return %c0_i32, %c0_i32_0 : i32, i32
  }
  func.func @transform_5(%arg0: i32) -> (i32, i32, i32) {
    %c0_i32 = arith.constant 0 : i32
    %c0_i32_0 = arith.constant 0 : i32
    %c0_i32_1 = arith.constant 0 : i32
    return %arg0, %c0_i32, %c0_i32_0 : i32, i32, i32
  }
}

</mosaic_0001>

<llo_original>
// kernel: tpu_custom_call.1
$region0: #{tpu_custom_call.1}
  #allocation0 [shape = 'u32[]', space=smem, size = 0x4, offset = 0x4, fixed_abs, tag = 'smem constant byte address 0x4 - core index']
  #allocation1 [shape = 'u32[144,128]{1,0:T(1,128)}', space=vmem, size = 0x12000, scoped, tag = 'internal scratch']
  %s0 = inlined_call_operand.hbm [shape: f32[2,8,512], index: 0, kind: input, shape index: {}]
  %s1 = inlined_call_operand.vmem [shape: f32[8,2], index: 1, kind: input, shape index: {}]
  %s2 = inlined_call_operand.vmem [shape: f32[1,2], index: 2, kind: input, shape index: {}]
  %s3 = inlined_call_operand.vmem [shape: f32[2,8], index: 3, kind: input, shape index: {}]
  %s4 = inlined_call_operand.vmem [shape: f32[1,8], index: 4, kind: input, shape index: {}]
  %s5 = inlined_call_operand.hbm [shape: f32[2,8,512], index: 5, kind: output, shape index: {}]
  %s6 = sld [smem:[#allocation0]]
  $region34: #{tpu_custom_call.1} parent=0
    _
  %s8 = ssub.s32 1, %s6
  %s9 = scalar_select 0, %s8, %s6
  $region1: #{tpu_custom_call.1} parent=0
    #allocation2 [shape = 'u8[32768]{0}', space=vmem, size = 0x8000, scoped, tag = 'input window, operand 0, single buffered']
    #allocation3 [shape = 's32[1]{0}', space=sflag, size = 0x4, scoped, tag = 'scoped memory for tpu_custom_call.1']
    #allocation4 [shape = 's32[1]{0}', space=sflag, size = 0x4, scoped, tag = 'scoped memory for tpu_custom_call.1']
    #allocation5 [shape = 'u8[32768]{0}', space=vmem, size = 0x8000, scoped, tag = 'output window, operand 0, single buffered']
    %10 = vsyncpa [#allocation3], 0
    %11 = vsyncpa [#allocation4], 0
    // Predicated region
    $region2: #{tpu_custom_call.1} parent=1 // pred_check
      _
    $region3: #{tpu_custom_call.1} parent=1 // pred_check_branch
      %13 = sbr.rel (0) target = $region5
    $region4: #{tpu_custom_call.1} parent=1 // pred_region
      %s15 = ssub.s32 1024, 1024
      %16 = vsyncadd [#allocation3], %s15
      %s17 = sshll.u32 [#allocation2], 4
      %s18 = int_to_ptr.vmem [resolvable:$true] %s17
      %23 = dma.hbm_to_vmem [thread:$0]  %s0, 1024, %s18, [#allocation3], 512, 512, 32
    $region5: #{tpu_custom_call.1} parent=1 // pred_fallthru
      _
    // Predicated region
    $region6: #{tpu_custom_call.1} parent=1 // pred_check
      _
    $region7: #{tpu_custom_call.1} parent=1 // pred_check_branch
      %25 = sbr.rel (0) target = $region9
    $region8: #{tpu_custom_call.1} parent=1 // pred_region
      _
    $region9: #{tpu_custom_call.1} parent=1 // pred_fallthru
      _
    // Predicated region
    $region10: #{tpu_custom_call.1} parent=1 // pred_check
      _
    $region11: #{tpu_custom_call.1} parent=1 // pred_check_branch
      %27 = sbr.rel (0) target = $region13
    $region12: #{tpu_custom_call.1} parent=1 // pred_region
      _
    $region13: #{tpu_custom_call.1} parent=1 // pred_fallthru
      _
    // Predicated region
    $region14: #{tpu_custom_call.1} parent=1 // pred_check
      _
    $region15: #{tpu_custom_call.1} parent=1 // pred_check_branch
      %29 = sbr.rel (0) target = $region17
    $region16: #{tpu_custom_call.1} parent=1 // pred_region
      _
    $region17: #{tpu_custom_call.1} parent=1 // pred_fallthru
      _
    // Predicated region
    $region18: #{tpu_custom_call.1} parent=1 // pred_check
      _
    $region19: #{tpu_custom_call.1} parent=1 // pred_check_branch
      %31 = sbr.rel (0) target = $region21
    $region20: #{tpu_custom_call.1} parent=1 // pred_region
      _
    $region21: #{tpu_custom_call.1} parent=1 // pred_fallthru
      _
    // Predicated region
    $region22: #{tpu_custom_call.1} parent=1 // pred_check
      _
    $region23: #{tpu_custom_call.1} parent=1 // pred_check_branch
      %33 = sbr.rel (0) target = $region25
    $region24: #{tpu_custom_call.1} parent=1 // pred_region
      %34 = dma.done [#allocation3], 1024
    $region25: #{tpu_custom_call.1} parent=1 // pred_fallthru
      _
    %v35 = vld [vmem:[#allocation2] sm:$0xff]
    %v36 = vld [vmem:[#allocation2 + $0x8] sm:$0xff]
    %v37 = vld [vmem:[#allocation2 + $0x10] sm:$0xff]
    %v38 = vld [vmem:[#allocation2 + $0x18] sm:$0xff]
    %v39 = vld [vmem:[#allocation2 + $0x20] sm:$0xff]
    %v40 = vld [vmem:[#allocation2 + $0x28] sm:$0xff]
    %v41 = vld [vmem:[#allocation2 + $0x30] sm:$0xff]
    %v42 = vld [vmem:[#allocation2 + $0x38] sm:$0xff]
    %v43 = vadd.f32 %v35, %v36
    %v44 = vadd.f32 %v43, %v37
    %v45 = vadd.f32 %v44, %v38
    %46 = vadd.xlane.f32.xlu0 %v45
    %v47 = vpop.xlane.xlu0 %46
    %v48 = vadd.f32 %v39, %v40
    %v49 = vadd.f32 %v48, %v41
    %v50 = vadd.f32 %v49, %v42
    %51 = vadd.xlane.f32.xlu0 %v50
    %v52 = vpop.xlane.xlu0 %51
    %v53 = vmul.f32 %v47, 0.001953125
    %v54 = vmul.f32 %v52, 0.001953125
    %v55 = vld [vmem:[%s1] sm:$0xff]
    %v56 = vld [vmem:[%s2] sm:$0x1]
    %v58 = vlaneseq
    %v59 = vshrl.u32 %v58, 7
    %v60 = vsub.s32 0, %v59
    %v61 = vrot.slane %v56, %v60
    %v65 = vlaneseq
    %v66 = vand.u32 %v65, 127
    %v67 = vlaneseq
    %v68 = vshrl.u32 %v67, 7
    %v69 = vsub.s32 %v66, %v68
    %v70 = vrot.slane %v53, %v69
    %v71 = vlaneseq
    %v72 = vshrl.u32 %v71, 7
    %v73 = vsub.s32 %v66, %v72
    %v74 = vrot.slane %v54, %v73
    %vm75 = vcmask 1041409
    %v76 = vsel %vm75, %v74, %v70
    %vm77 = vcmask 64512
    %v78 = vsel %vm77, %v76, 0
    %80 = vmatprep.subr.mxu0 0.0
    %v81 = vand.u32 %v55, 4294901760
    %82 = vmatpush1.msra.mxu0 %v81
    %83 = vmatprep.subr.mxu0 0.0
    %84 = vmatpush1.msra.mxu0 0.0
    %85 = vmatprep.subr.mxu0 0.0
    %86 = vmatpush1.msra.mxu0 0.0
    %87 = vmatprep.subr.mxu0 0.0
    %88 = vmatpush1.msra.mxu0 0.0
    %89 = vmatprep.subr.mxu0 0.0
    %90 = vmatpush1.msra.mxu0 0.0
    %91 = vmatprep.subr.mxu0 0.0
    %92 = vmatpush1.msra.mxu0 0.0
    %93 = vmatprep.subr.mxu0 0.0
    %94 = vmatpush1.msra.mxu0 0.0
    %95 = vmatprep.subr.mxu0 0.0
    %96 = vmatpush1.msra.mxu0 0.0
    %97 = vmatprep.subr.mxu0 0.0
    %98 = vmatpush1.msra.mxu0 0.0
    %99 = vmatprep.subr.mxu0 0.0
    %100 = vmatpush1.msra.mxu0 0.0
    %101 = vmatprep.subr.mxu0 0.0
    %102 = vmatpush1.msra.mxu0 0.0
    %103 = vmatprep.subr.mxu0 0.0
    %104 = vmatpush1.msra.mxu0 0.0
    %105 = vmatprep.subr.mxu0 0.0
    %106 = vmatpush1.msra.mxu0 0.0
    %107 = vmatprep.subr.mxu0 0.0
    %108 = vmatpush1.msra.mxu0 0.0
    %109 = vmatprep.subr.mxu0 0.0
    %110 = vmatpush1.msra.mxu0 0.0
    %111 = vmatprep.subr.mxu0 0.0
    %112 = vmatpush1.msra.mxu0 0.0
    %113 = vmatprep.subr.mxu0 0.0
    %114 = vmatpush1.msra.mxu0 0.0
    %115 = vmatprep.subr.mxu0 0.0
    %116 = vmatpush1.msra.mxu0 0.0
    %117 = vmatprep.subr.mxu0 0.0
    %118 = vmatpush1.msra.mxu0 0.0
    %119 = vmatprep.subr.mxu0 0.0
    %120 = vmatpush1.msra.mxu0 0.0
    %121 = vmatprep.subr.mxu0 0.0
    %122 = vmatpush1.msra.mxu0 0.0
    %123 = vmatprep.subr.mxu0 0.0
    %124 = vmatpush1.msra.mxu0 0.0
    %125 = vmatprep.subr.mxu0 0.0
    %126 = vmatpush1.msra.mxu0 0.0
    %127 = vmatprep.subr.mxu0 0.0
    %128 = vmatpush1.msra.mxu0 0.0
    %129 = vmatprep.subr.mxu0 0.0
    %130 = vmatpush1.msra.mxu0 0.0
    %131 = vmatprep.subr.mxu0 0.0
    %132 = vmatpush1.msra.mxu0 0.0
    %133 = vmatprep.subr.mxu0 0.0
    %134 = vmatpush1.msra.mxu0 0.0
    %135 = vmatprep.subr.mxu0 0.0
    %136 = vmatpush1.msra.mxu0 0.0
    %137 = vmatprep.subr.mxu0 0.0
    %138 = vmatpush1.msra.mxu0 0.0
    %139 = vmatprep.subr.mxu0 0.0
    %140 = vmatpush1.msra.mxu0 0.0
    %141 = vmatprep.subr.mxu0 0.0
    %142 = vmatpush1.msra.mxu0 0.0
    %143 = vmatprep.subr.mxu0 0.0
    %144 = vmatpush1.msra.mxu0 0.0
    %145 = vmatprep.mubr.f32.mxu0 0.0
    %v146 = vand.u32 %v78, 4294901760
    %v147 = vsub.f32 %v78, %v146
    %v148 = vand.u32 %v147, 4294901760
    %v149 = vsub.f32 %v147, %v148
    %v150 = vand.u32 %v149, 4294901760
    %151 = vmatmul.mubr.f32.gmra.mrb[0].mxu0 %v150
    %v152 = vpop.f32.mrb[0].mxu0
    %v153 = vadd.f32 %v61, %v152
    %v154 = vpop.f32.mrb[0].mxu0
    %155 = vdwg.mxu0
    %156 = vmatprep.subr.mxu0 0.0
    %v157 = vand.u32 %v55, 4294901760
    %v158 = vsub.f32 %v55, %v157
    %v159 = vand.u32 %v158, 4294901760
    %v160 = vsub.f32 %v158, %v159
    %v161 = vand.u32 %v160, 4294901760
    %162 = vmatpush1.msra.mxu0 %v161
    %163 = vmatprep.subr.mxu0 0.0
    %164 = vmatpush1.msra.mxu0 0.0
    %165 = vmatprep.subr.mxu0 0.0
    %166 = vmatpush1.msra.mxu0 0.0
    %167 = vmatprep.subr.mxu0 0.0
    %168 = vmatpush1.msra.mxu0 0.0
    %169 = vmatprep.subr.mxu0 0.0
    %170 = vmatpush1.msra.mxu0 0.0
    %171 = vmatprep.subr.mxu0 0.0
    %172 = vmatpush1.msra.mxu0 0.0
    %173 = vmatprep.subr.mxu0 0.0
    %174 = vmatpush1.msra.mxu0 0.0
    %175 = vmatprep.subr.mxu0 0.0
    %176 = vmatpush1.msra.mxu0 0.0
    %177 = vmatprep.subr.mxu0 0.0
    %178 = vmatpush1.msra.mxu0 0.0
    %179 = vmatprep.subr.mxu0 0.0
    %180 = vmatpush1.msra.mxu0 0.0
    %181 = vmatprep.subr.mxu0 0.0
    %182 = vmatpush1.msra.mxu0 0.0
    %183 = vmatprep.subr.mxu0 0.0
    %184 = vmatpush1.msra.mxu0 0.0
    %185 = vmatprep.subr.mxu0 0.0
    %186 = vmatpush1.msra.mxu0 0.0
    %187 = vmatprep.subr.mxu0 0.0
    %188 = vmatpush1.msra.mxu0 0.0
    %189 = vmatprep.subr.mxu0 0.0
    %190 = vmatpush1.msra.mxu0 0.0
    %191 = vmatprep.subr.mxu0 0.0
    %192 = vmatpush1.msra.mxu0 0.0
    %193 = vmatprep.subr.mxu0 0.0
    %194 = vmatpush1.msra.mxu0 0.0
    %195 = vmatprep.subr.mxu0 0.0
    %196 = vmatpush1.msra.mxu0 0.0
    %197 = vmatprep.subr.mxu0 0.0
    %198 = vmatpush1.msra.mxu0 0.0
    %199 = vmatprep.subr.mxu0 0.0
    %200 = vmatpush1.msra.mxu0 0.0
    %201 = vmatprep.subr.mxu0 0.0
    %202 = vmatpush1.msra.mxu0 0.0
    %203 = vmatprep.subr.mxu0 0.0
    %204 = vmatpush1.msra.mxu0 0.0
    %205 = vmatprep.subr.mxu0 0.0
    %206 = vmatpush1.msra.mxu0 0.0
    %207 = vmatprep.subr.mxu0 0.0
    %208 = vmatpush1.msra.mxu0 0.0
    %209 = vmatprep.subr.mxu0 0.0
    %210 = vmatpush1.msra.mxu0 0.0
    %211 = vmatprep.subr.mxu0 0.0
    %212 = vmatpush1.msra.mxu0 0.0
    %213 = vmatprep.subr.mxu0 0.0
    %214 = vmatpush1.msra.mxu0 0.0
    %215 = vmatprep.subr.mxu0 0.0
    %216 = vmatpush1.msra.mxu0 0.0
    %217 = vmatprep.subr.mxu0 0.0
    %218 = vmatpush1.msra.mxu0 0.0
    %219 = vmatprep.subr.mxu0 0.0
    %220 = vmatpush1.msra.mxu0 0.0
    %221 = vmatprep.subr.mxu0 0.0
    %222 = vmatpush1.msra.mxu0 0.0
    %223 = vmatprep.subr.mxu0 0.0
    %224 = vmatpush1.msra.mxu0 0.0
    %225 = vmatprep.mubr.f32.mxu0 0.0
    %v226 = vand.u32 %v78, 4294901760
    %227 = vmatmul.mubr.f32.gmra.mrb[0].mxu0 %v226
    %v228 = vpop.f32.mrb[0].mxu0
    %v229 = vadd.f32 %v153, %v228
    %v230 = vpop.f32.mrb[0].mxu0
    %231 = vdwg.mxu0
    %232 = vmatprep.subr.mxu0 0.0
    %v233 = vand.u32 %v55, 4294901760
    %v234 = vsub.f32 %v55, %v233
    %235 = vmatpush1.msra.mxu0 %v234
    %236 = vmatprep.subr.mxu0 0.0
    %237 = vmatpush1.msra.mxu0 0.0
    %238 = vmatprep.subr.mxu0 0.0
    %239 = vmatpush1.msra.mxu0 0.0
    %240 = vmatprep.subr.mxu0 0.0
    %241 = vmatpush1.msra.mxu0 0.0
    %242 = vmatprep.subr.mxu0 0.0
    %243 = vmatpush1.msra.mxu0 0.0
    %244 = vmatprep.subr.mxu0 0.0
    %245 = vmatpush1.msra.mxu0 0.0
    %246 = vmatprep.subr.mxu0 0.0
    %247 = vmatpush1.msra.mxu0 0.0
    %248 = vmatprep.subr.mxu0 0.0
    %249 = vmatpush1.msra.mxu0 0.0
    %250 = vmatprep.subr.mxu0 0.0
    %251 = vmatpush1.msra.mxu0 0.0
    %252 = vmatprep.subr.mxu0 0.0
    %253 = vmatpush1.msra.mxu0 0.0
    %254 = vmatprep.subr.mxu0 0.0
    %255 = vmatpush1.msra.mxu0 0.0
    %256 = vmatprep.subr.mxu0 0.0
    %257 = vmatpush1.msra.mxu0 0.0
    %258 = vmatprep.subr.mxu0 0.0
    %259 = vmatpush1.msra.mxu0 0.0
    %260 = vmatprep.subr.mxu0 0.0
    %261 = vmatpush1.msra.mxu0 0.0
    %262 = vmatprep.subr.mxu0 0.0
    %263 = vmatpush1.msra.mxu0 0.0
    %264 = vmatprep.subr.mxu0 0.0
    %265 = vmatpush1.msra.mxu0 0.0
    %266 = vmatprep.subr.mxu0 0.0
    %267 = vmatpush1.msra.mxu0 0.0
    %268 = vmatprep.subr.mxu0 0.0
    %269 = vmatpush1.msra.mxu0 0.0
    %270 = vmatprep.subr.mxu0 0.0
    %271 = vmatpush1.msra.mxu0 0.0
    %272 = vmatprep.subr.mxu0 0.0
    %273 = vmatpush1.msra.mxu0 0.0
    %274 = vmatprep.subr.mxu0 0.0
    %275 = vmatpush1.msra.mxu0 0.0
    %276 = vmatprep.subr.mxu0 0.0
    %277 = vmatpush1.msra.mxu0 0.0
    %278 = vmatprep.subr.mxu0 0.0
    %279 = vmatpush1.msra.mxu0 0.0
    %280 = vmatprep.subr.mxu0 0.0
    %281 = vmatpush1.msra.mxu0 0.0
    %282 = vmatprep.subr.mxu0 0.0
    %283 = vmatpush1.msra.mxu0 0.0
    %284 = vmatprep.subr.mxu0 0.0
    %285 = vmatpush1.msra.mxu0 0.0
    %286 = vmatprep.subr.mxu0 0.0
    %287 = vmatpush1.msra.mxu0 0.0
    %288 = vmatprep.subr.mxu0 0.0
    %289 = vmatpush1.msra.mxu0 0.0
    %290 = vmatprep.subr.mxu0 0.0
    %291 = vmatpush1.msra.mxu0 0.0
    %292 = vmatprep.subr.mxu0 0.0
    %293 = vmatpush1.msra.mxu0 0.0
    %294 = vmatprep.subr.mxu0 0.0
    %295 = vmatpush1.msra.mxu0 0.0
    %296 = vmatprep.subr.mxu0 0.0
    %297 = vmatpush1.msra.mxu0 0.0
    %298 = vmatprep.mubr.f32.mxu0 0.0
    %v299 = vand.u32 %v78, 4294901760
    %v300 = vsub.f32 %v78, %v299
    %301 = vmatmul.mubr.f32.gmra.mrb[0].mxu0 %v300
    %v302 = vpop.f32.mrb[0].mxu0
    %v303 = vadd.f32 %v229, %v302
    %v304 = vpop.f32.mrb[0].mxu0
    %305 = vdwg.mxu0
    %306 = vmatprep.subr.mxu0 0.0
    %v307 = vand.u32 %v55, 4294901760
    %308 = vmatpush1.msra.mxu0 %v307
    %309 = vmatprep.subr.mxu0 0.0
    %310 = vmatpush1.msra.mxu0 0.0
    %311 = vmatprep.subr.mxu0 0.0
    %312 = vmatpush1.msra.mxu0 0.0
    %313 = vmatprep.subr.mxu0 0.0
    %314 = vmatpush1.msra.mxu0 0.0
    %315 = vmatprep.subr.mxu0 0.0
    %316 = vmatpush1.msra.mxu0 0.0
    %317 = vmatprep.subr.mxu0 0.0
    %318 = vmatpush1.msra.mxu0 0.0
    %319 = vmatprep.subr.mxu0 0.0
    %320 = vmatpush1.msra.mxu0 0.0
    %321 = vmatprep.subr.mxu0 0.0
    %322 = vmatpush1.msra.mxu0 0.0
    %323 = vmatprep.subr.mxu0 0.0
    %324 = vmatpush1.msra.mxu0 0.0
    %325 = vmatprep.subr.mxu0 0.0
    %326 = vmatpush1.msra.mxu0 0.0
    %327 = vmatprep.subr.mxu0 0.0
    %328 = vmatpush1.msra.mxu0 0.0
    %329 = vmatprep.subr.mxu0 0.0
    %330 = vmatpush1.msra.mxu0 0.0
    %331 = vmatprep.subr.mxu0 0.0
    %332 = vmatpush1.msra.mxu0 0.0
    %333 = vmatprep.subr.mxu0 0.0
    %334 = vmatpush1.msra.mxu0 0.0
    %335 = vmatprep.subr.mxu0 0.0
    %336 = vmatpush1.msra.mxu0 0.0
    %337 = vmatprep.subr.mxu0 0.0
    %338 = vmatpush1.msra.mxu0 0.0
    %339 = vmatprep.subr.mxu0 0.0
    %340 = vmatpush1.msra.mxu0 0.0
    %341 = vmatprep.subr.mxu0 0.0
    %342 = vmatpush1.msra.mxu0 0.0
    %343 = vmatprep.subr.mxu0 0.0
    %344 = vmatpush1.msra.mxu0 0.0
    %345 = vmatprep.subr.mxu0 0.0
    %346 = vmatpush1.msra.mxu0 0.0
    %347 = vmatprep.subr.mxu0 0.0
    %348 = vmatpush1.msra.mxu0 0.0
    %349 = vmatprep.subr.mxu0 0.0
    %350 = vmatpush1.msra.mxu0 0.0
    %351 = vmatprep.subr.mxu0 0.0
    %352 = vmatpush1.msra.mxu0 0.0
    %353 = vmatprep.subr.mxu0 0.0
    %354 = vmatpush1.msra.mxu0 0.0
    %355 = vmatprep.subr.mxu0 0.0
    %356 = vmatpush1.msra.mxu0 0.0
    %357 = vmatprep.subr.mxu0 0.0
    %358 = vmatpush1.msra.mxu0 0.0
    %359 = vmatprep.subr.mxu0 0.0
    %360 = vmatpush1.msra.mxu0 0.0
    %361 = vmatprep.subr.mxu0 0.0
    %362 = vmatpush1.msra.mxu0 0.0
    %363 = vmatprep.subr.mxu0 0.0
    %364 = vmatpush1.msra.mxu0 0.0
    %365 = vmatprep.subr.mxu0 0.0
    %366 = vmatpush1.msra.mxu0 0.0
    %367 = vmatprep.subr.mxu0 0.0
    %368 = vmatpush1.msra.mxu0 0.0
    %369 = vmatprep.subr.mxu0 0.0
    %370 = vmatpush1.msra.mxu0 0.0
    %371 = vmatprep.mubr.f32.mxu0 0.0
    %v372 = vand.u32 %v78, 4294901760
    %v373 = vsub.f32 %v78, %v372
    %v374 = vand.u32 %v373, 4294901760
    %375 = vmatmul.mubr.f32.gmra.mrb[0].mxu0 %v374
    %v376 = vpop.f32.mrb[0].mxu0
    %v377 = vadd.f32 %v303, %v376
    %v378 = vpop.f32.mrb[0].mxu0
    %379 = vdwg.mxu0
    %380 = vmatprep.subr.mxu0 0.0
    %v381 = vand.u32 %v55, 4294901760
    %v382 = vsub.f32 %v55, %v381
    %v383 = vand.u32 %v382, 4294901760
    %384 = vmatpush1.msra.mxu0 %v383
    %385 = vmatprep.subr.mxu0 0.0
    %386 = vmatpush1.msra.mxu0 0.0
    %387 = vmatprep.subr.mxu0 0.0
    %388 = vmatpush1.msra.mxu0 0.0
    %389 = vmatprep.subr.mxu0 0.0
    %390 = vmatpush1.msra.mxu0 0.0
    %391 = vmatprep.subr.mxu0 0.0
    %392 = vmatpush1.msra.mxu0 0.0
    %393 = vmatprep.subr.mxu0 0.0
    %394 = vmatpush1.msra.mxu0 0.0
    %395 = vmatprep.subr.mxu0 0.0
    %396 = vmatpush1.msra.mxu0 0.0
    %397 = vmatprep.subr.mxu0 0.0
    %398 = vmatpush1.msra.mxu0 0.0
    %399 = vmatprep.subr.mxu0 0.0
    %400 = vmatpush1.msra.mxu0 0.0
    %401 = vmatprep.subr.mxu0 0.0
    %402 = vmatpush1.msra.mxu0 0.0
    %403 = vmatprep.subr.mxu0 0.0
    %404 = vmatpush1.msra.mxu0 0.0
    %405 = vmatprep.subr.mxu0 0.0
    %406 = vmatpush1.msra.mxu0 0.0
    %407 = vmatprep.subr.mxu0 0.0
    %408 = vmatpush1.msra.mxu0 0.0
    %409 = vmatprep.subr.mxu0 0.0
    %410 = vmatpush1.msra.mxu0 0.0
    %411 = vmatprep.subr.mxu0 0.0
    %412 = vmatpush1.msra.mxu0 0.0
    %413 = vmatprep.subr.mxu0 0.0
    %414 = vmatpush1.msra.mxu0 0.0
    %415 = vmatprep.subr.mxu0 0.0
    %416 = vmatpush1.msra.mxu0 0.0
    %417 = vmatprep.subr.mxu0 0.0
    %418 = vmatpush1.msra.mxu0 0.0
    %419 = vmatprep.subr.mxu0 0.0
    %420 = vmatpush1.msra.mxu0 0.0
    %421 = vmatprep.subr.mxu0 0.0
    %422 = vmatpush1.msra.mxu0 0.0
    %423 = vmatprep.subr.mxu0 0.0
    %424 = vmatpush1.msra.mxu0 0.0
    %425 = vmatprep.subr.mxu0 0.0
    %426 = vmatpush1.msra.mxu0 0.0
    %427 = vmatprep.subr.mxu0 0.0
    %428 = vmatpush1.msra.mxu0 0.0
    %429 = vmatprep.subr.mxu0 0.0
    %430 = vmatpush1.msra.mxu0 0.0
    %431 = vmatprep.subr.mxu0 0.0
    %432 = vmatpush1.msra.mxu0 0.0
    %433 = vmatprep.subr.mxu0 0.0
    %434 = vmatpush1.msra.mxu0 0.0
    %435 = vmatprep.subr.mxu0 0.0
    %436 = vmatpush1.msra.mxu0 0.0
    %437 = vmatprep.subr.mxu0 0.0
    %438 = vmatpush1.msra.mxu0 0.0
    %439 = vmatprep.subr.mxu0 0.0
    %440 = vmatpush1.msra.mxu0 0.0
    %441 = vmatprep.subr.mxu0 0.0
    %442 = vmatpush1.msra.mxu0 0.0
    %443 = vmatprep.subr.mxu0 0.0
    %444 = vmatpush1.msra.mxu0 0.0
    %445 = vmatprep.subr.mxu0 0.0
    %446 = vmatpush1.msra.mxu0 0.0
    %447 = vmatprep.mubr.f32.mxu0 0.0
    %v448 = vand.u32 %v78, 4294901760
    %449 = vmatmul.mubr.f32.gmra.mrb[0].mxu0 %v448
    %v450 = vpop.f32.mrb[0].mxu0
    %v451 = vadd.f32 %v377, %v450
    %v452 = vpop.f32.mrb[0].mxu0
    %453 = vdwg.mxu0
    %454 = vmatprep.subr.mxu0 0.0
    %v455 = vand.u32 %v55, 4294901760
    %456 = vmatpush1.msra.mxu0 %v455
    %457 = vmatprep.subr.mxu0 0.0
    %458 = vmatpush1.msra.mxu0 0.0
    %459 = vmatprep.subr.mxu0 0.0
    %460 = vmatpush1.msra.mxu0 0.0
    %461 = vmatprep.subr.mxu0 0.0
    %462 = vmatpush1.msra.mxu0 0.0
    %463 = vmatprep.subr.mxu0 0.0
    %464 = vmatpush1.msra.mxu0 0.0
    %465 = vmatprep.subr.mxu0 0.0
    %466 = vmatpush1.msra.mxu0 0.0
    %467 = vmatprep.subr.mxu0 0.0
    %468 = vmatpush1.msra.mxu0 0.0
    %469 = vmatprep.subr.mxu0 0.0
    %470 = vmatpush1.msra.mxu0 0.0
    %471 = vmatprep.subr.mxu0 0.0
    %472 = vmatpush1.msra.mxu0 0.0
    %473 = vmatprep.subr.mxu0 0.0
    %474 = vmatpush1.msra.mxu0 0.0
    %475 = vmatprep.subr.mxu0 0.0
    %476 = vmatpush1.msra.mxu0 0.0
    %477 = vmatprep.subr.mxu0 0.0
    %478 = vmatpush1.msra.mxu0 0.0
    %479 = vmatprep.subr.mxu0 0.0
    %480 = vmatpush1.msra.mxu0 0.0
    %481 = vmatprep.subr.mxu0 0.0
    %482 = vmatpush1.msra.mxu0 0.0
    %483 = vmatprep.subr.mxu0 0.0
    %484 = vmatpush1.msra.mxu0 0.0
    %485 = vmatprep.subr.mxu0 0.0
    %486 = vmatpush1.msra.mxu0 0.0
    %487 = vmatprep.subr.mxu0 0.0
    %488 = vmatpush1.msra.mxu0 0.0
    %489 = vmatprep.subr.mxu0 0.0
    %490 = vmatpush1.msra.mxu0 0.0
    %491 = vmatprep.subr.mxu0 0.0
    %492 = vmatpush1.msra.mxu0 0.0
    %493 = vmatprep.subr.mxu0 0.0
    %494 = vmatpush1.msra.mxu0 0.0
    %495 = vmatprep.subr.mxu0 0.0
    %496 = vmatpush1.msra.mxu0 0.0
    %497 = vmatprep.subr.mxu0 0.0
    %498 = vmatpush1.msra.mxu0 0.0
    %499 = vmatprep.subr.mxu0 0.0
    %500 = vmatpush1.msra.mxu0 0.0
    %501 = vmatprep.subr.mxu0 0.0
    %502 = vmatpush1.msra.mxu0 0.0
    %503 = vmatprep.subr.mxu0 0.0
    %504 = vmatpush1.msra.mxu0 0.0
    %505 = vmatprep.subr.mxu0 0.0
    %506 = vmatpush1.msra.mxu0 0.0
    %507 = vmatprep.subr.mxu0 0.0
    %508 = vmatpush1.msra.mxu0 0.0
    %509 = vmatprep.subr.mxu0 0.0
    %510 = vmatpush1.msra.mxu0 0.0
    %511 = vmatprep.subr.mxu0 0.0
    %512 = vmatpush1.msra.mxu0 0.0
    %513 = vmatprep.subr.mxu0 0.0
    %514 = vmatpush1.msra.mxu0 0.0
    %515 = vmatprep.subr.mxu0 0.0
    %516 = vmatpush1.msra.mxu0 0.0
    %517 = vmatprep.subr.mxu0 0.0
    %518 = vmatpush1.msra.mxu0 0.0
    %519 = vmatprep.mubr.f32.mxu0 0.0
    %v520 = vand.u32 %v78, 4294901760
    %521 = vmatmul.mubr.f32.gmra.mrb[0].mxu0 %v520
    %v522 = vpop.f32.mrb[0].mxu0
    %v523 = vadd.f32 %v451, %v522
    %v524 = vpop.f32.mrb[0].mxu0
    %525 = vdwg.mxu0
    %v526 = vmax.f32 %v523, 0.0
    %v527 = vld [vmem:[%s3] sm:$0x3]
    %v528 = vld [vmem:[%s4] sm:$0x1]
    %v530 = vlaneseq
    %v531 = vshrl.u32 %v530, 7
    %v532 = vsub.s32 0, %v531
    %v533 = vrot.slane %v528, %v532
    %vm535 = vcmask 15360
    %v537 = vsel %vm535, %v526, 0
    %vm539 = vcmask 1041408
    %v541 = vsel %vm539, %v527, 0
    %543 = vmatprep.subr.mxu0 0.0
    %v544 = vand.u32 %v541, 4294901760
    %545 = vmatpush1.msra.mxu0 %v544
    %546 = vmatprep.subr.mxu0 0.0
    %547 = vmatpush1.msra.mxu0 0.0
    %548 = vmatprep.subr.mxu0 0.0
    %549 = vmatpush1.msra.mxu0 0.0
    %550 = vmatprep.subr.mxu0 0.0
    %551 = vmatpush1.msra.mxu0 0.0
    %552 = vmatprep.subr.mxu0 0.0
    %553 = vmatpush1.msra.mxu0 0.0
    %554 = vmatprep.subr.mxu0 0.0
    %555 = vmatpush1.msra.mxu0 0.0
    %556 = vmatprep.subr.mxu0 0.0
    %557 = vmatpush1.msra.mxu0 0.0
    %558 = vmatprep.subr.mxu0 0.0
    %559 = vmatpush1.msra.mxu0 0.0
    %560 = vmatprep.subr.mxu0 0.0
    %561 = vmatpush1.msra.mxu0 0.0
    %562 = vmatprep.subr.mxu0 0.0
    %563 = vmatpush1.msra.mxu0 0.0
    %564 = vmatprep.subr.mxu0 0.0
    %565 = vmatpush1.msra.mxu0 0.0
    %566 = vmatprep.subr.mxu0 0.0
    %567 = vmatpush1.msra.mxu0 0.0
    %568 = vmatprep.subr.mxu0 0.0
    %569 = vmatpush1.msra.mxu0 0.0
    %570 = vmatprep.subr.mxu0 0.0
    %571 = vmatpush1.msra.mxu0 0.0
    %572 = vmatprep.subr.mxu0 0.0
    %573 = vmatpush1.msra.mxu0 0.0
    %574 = vmatprep.subr.mxu0 0.0
    %575 = vmatpush1.msra.mxu0 0.0
    %576 = vmatprep.subr.mxu0 0.0
    %577 = vmatpush1.msra.mxu0 0.0
    %578 = vmatprep.subr.mxu0 0.0
    %579 = vmatpush1.msra.mxu0 0.0
    %580 = vmatprep.subr.mxu0 0.0
    %581 = vmatpush1.msra.mxu0 0.0
    %582 = vmatprep.subr.mxu0 0.0
    %583 = vmatpush1.msra.mxu0 0.0
    %584 = vmatprep.subr.mxu0 0.0
    %585 = vmatpush1.msra.mxu0 0.0
    %586 = vmatprep.subr.mxu0 0.0
    %587 = vmatpush1.msra.mxu0 0.0
    %588 = vmatprep.subr.mxu0 0.0
    %589 = vmatpush1.msra.mxu0 0.0
    %590 = vmatprep.subr.mxu0 0.0
    %591 = vmatpush1.msra.mxu0 0.0
    %592 = vmatprep.subr.mxu0 0.0
    %593 = vmatpush1.msra.mxu0 0.0
    %594 = vmatprep.subr.mxu0 0.0
    %595 = vmatpush1.msra.mxu0 0.0
    %596 = vmatprep.subr.mxu0 0.0
    %597 = vmatpush1.msra.mxu0 0.0
    %598 = vmatprep.subr.mxu0 0.0
    %599 = vmatpush1.msra.mxu0 0.0
    %600 = vmatprep.subr.mxu0 0.0
    %601 = vmatpush1.msra.mxu0 0.0
    %602 = vmatprep.subr.mxu0 0.0
    %603 = vmatpush1.msra.mxu0 0.0
    %604 = vmatprep.subr.mxu0 0.0
    %605 = vmatpush1.msra.mxu0 0.0
    %606 = vmatprep.subr.mxu0 0.0
    %607 = vmatpush1.msra.mxu0 0.0
    %608 = vmatprep.mubr.f32.mxu0 0.0
    %v609 = vand.u32 %v537, 4294901760
    %v610 = vsub.f32 %v537, %v609
    %v611 = vand.u32 %v610, 4294901760
    %v612 = vsub.f32 %v610, %v611
    %v613 = vand.u32 %v612, 4294901760
    %614 = vmatmul.mubr.f32.gmra.mrb[0].mxu0 %v613
    %v615 = vpop.f32.mrb[0].mxu0
    %v616 = vadd.f32 %v533, %v615
    %v617 = vpop.f32.mrb[0].mxu0
    %618 = vdwg.mxu0
    %619 = vmatprep.subr.mxu0 0.0
    %v620 = vand.u32 %v541, 4294901760
    %v621 = vsub.f32 %v541, %v620
    %v622 = vand.u32 %v621, 4294901760
    %v623 = vsub.f32 %v621, %v622
    %v624 = vand.u32 %v623, 4294901760
    %625 = vmatpush1.msra.mxu0 %v624
    %626 = vmatprep.subr.mxu0 0.0
    %627 = vmatpush1.msra.mxu0 0.0
    %628 = vmatprep.subr.mxu0 0.0
    %629 = vmatpush1.msra.mxu0 0.0
    %630 = vmatprep.subr.mxu0 0.0
    %631 = vmatpush1.msra.mxu0 0.0
    %632 = vmatprep.subr.mxu0 0.0
    %633 = vmatpush1.msra.mxu0 0.0
    %634 = vmatprep.subr.mxu0 0.0
    %635 = vmatpush1.msra.mxu0 0.0
    %636 = vmatprep.subr.mxu0 0.0
    %637 = vmatpush1.msra.mxu0 0.0
    %638 = vmatprep.subr.mxu0 0.0
    %639 = vmatpush1.msra.mxu0 0.0
    %640 = vmatprep.subr.mxu0 0.0
    %641 = vmatpush1.msra.mxu0 0.0
    %642 = vmatprep.subr.mxu0 0.0
    %643 = vmatpush1.msra.mxu0 0.0
    %644 = vmatprep.subr.mxu0 0.0
    %645 = vmatpush1.msra.mxu0 0.0
    %646 = vmatprep.subr.mxu0 0.0
    %647 = vmatpush1.msra.mxu0 0.0
    %648 = vmatprep.subr.mxu0 0.0
    %649 = vmatpush1.msra.mxu0 0.0
    %650 = vmatprep.subr.mxu0 0.0
    %651 = vmatpush1.msra.mxu0 0.0
    %652 = vmatprep.subr.mxu0 0.0
    %653 = vmatpush1.msra.mxu0 0.0
    %654 = vmatprep.subr.mxu0 0.0
    %655 = vmatpush1.msra.mxu0 0.0
    %656 = vmatprep.subr.mxu0 0.0
    %657 = vmatpush1.msra.mxu0 0.0
    %658 = vmatprep.subr.mxu0 0.0
    %659 = vmatpush1.msra.mxu0 0.0
    %660 = vmatprep.subr.mxu0 0.0
    %661 = vmatpush1.msra.mxu0 0.0
    %662 = vmatprep.subr.mxu0 0.0
    %663 = vmatpush1.msra.mxu0 0.0
    %664 = vmatprep.subr.mxu0 0.0
    %665 = vmatpush1.msra.mxu0 0.0
    %666 = vmatprep.subr.mxu0 0.0
    %667 = vmatpush1.msra.mxu0 0.0
    %668 = vmatprep.subr.mxu0 0.0
    %669 = vmatpush1.msra.mxu0 0.0
    %670 = vmatprep.subr.mxu0 0.0
    %671 = vmatpush1.msra.mxu0 0.0
    %672 = vmatprep.subr.mxu0 0.0
    %673 = vmatpush1.msra.mxu0 0.0
    %674 = vmatprep.subr.mxu0 0.0
    %675 = vmatpush1.msra.mxu0 0.0
    %676 = vmatprep.subr.mxu0 0.0
    %677 = vmatpush1.msra.mxu0 0.0
    %678 = vmatprep.subr.mxu0 0.0
    %679 = vmatpush1.msra.mxu0 0.0
    %680 = vmatprep.subr.mxu0 0.0
    %681 = vmatpush1.msra.mxu0 0.0
    %682 = vmatprep.subr.mxu0 0.0
    %683 = vmatpush1.msra.mxu0 0.0
    %684 = vmatprep.subr.mxu0 0.0
    %685 = vmatpush1.msra.mxu0 0.0
    %686 = vmatprep.subr.mxu0 0.0
    %687 = vmatpush1.msra.mxu0 0.0
    %688 = vmatprep.mubr.f32.mxu0 0.0
    %v689 = vand.u32 %v537, 4294901760
    %690 = vmatmul.mubr.f32.gmra.mrb[0].mxu0 %v689
    %v691 = vpop.f32.mrb[0].mxu0
    %v692 = vadd.f32 %v616, %v691
    %v693 = vpop.f32.mrb[0].mxu0
    %694 = vdwg.mxu0
    %695 = vmatprep.subr.mxu0 0.0
    %v696 = vand.u32 %v541, 4294901760
    %v697 = vsub.f32 %v541, %v696
    %698 = vmatpush1.msra.mxu0 %v697
    %699 = vmatprep.subr.mxu0 0.0
    %700 = vmatpush1.msra.mxu0 0.0
    %701 = vmatprep.subr.mxu0 0.0
    %702 = vmatpush1.msra.mxu0 0.0
    %703 = vmatprep.subr.mxu0 0.0
    %704 = vmatpush1.msra.mxu0 0.0
    %705 = vmatprep.subr.mxu0 0.0
    %706 = vmatpush1.msra.mxu0 0.0
    %707 = vmatprep.subr.mxu0 0.0
    %708 = vmatpush1.msra.mxu0 0.0
    %709 = vmatprep.subr.mxu0 0.0
    %710 = vmatpush1.msra.mxu0 0.0
    %711 = vmatprep.subr.mxu0 0.0
    %712 = vmatpush1.msra.mxu0 0.0
    %713 = vmatprep.subr.mxu0 0.0
    %714 = vmatpush1.msra.mxu0 0.0
    %715 = vmatprep.subr.mxu0 0.0
    %716 = vmatpush1.msra.mxu0 0.0
    %717 = vmatprep.subr.mxu0 0.0
    %718 = vmatpush1.msra.mxu0 0.0
    %719 = vmatprep.subr.mxu0 0.0
    %720 = vmatpush1.msra.mxu0 0.0
    %721 = vmatprep.subr.mxu0 0.0
    %722 = vmatpush1.msra.mxu0 0.0
    %723 = vmatprep.subr.mxu0 0.0
    %724 = vmatpush1.msra.mxu0 0.0
    %725 = vmatprep.subr.mxu0 0.0
    %726 = vmatpush1.msra.mxu0 0.0
    %727 = vmatprep.subr.mxu0 0.0
    %728 = vmatpush1.msra.mxu0 0.0
    %729 = vmatprep.subr.mxu0 0.0
    %730 = vmatpush1.msra.mxu0 0.0
    %731 = vmatprep.subr.mxu0 0.0
    %732 = vmatpush1.msra.mxu0 0.0
    %733 = vmatprep.subr.mxu0 0.0
    %734 = vmatpush1.msra.mxu0 0.0
    %735 = vmatprep.subr.mxu0 0.0
    %736 = vmatpush1.msra.mxu0 0.0
    %737 = vmatprep.subr.mxu0 0.0
    %738 = vmatpush1.msra.mxu0 0.0
    %739 = vmatprep.subr.mxu0 0.0
    %740 = vmatpush1.msra.mxu0 0.0
    %741 = vmatprep.subr.mxu0 0.0
    %742 = vmatpush1.msra.mxu0 0.0
    %743 = vmatprep.subr.mxu0 0.0
    %744 = vmatpush1.msra.mxu0 0.0
    %745 = vmatprep.subr.mxu0 0.0
    %746 = vmatpush1.msra.mxu0 0.0
    %747 = vmatprep.subr.mxu0 0.0
    %748 = vmatpush1.msra.mxu0 0.0
    %749 = vmatprep.subr.mxu0 0.0
    %750 = vmatpush1.msra.mxu0 0.0
    %751 = vmatprep.subr.mxu0 0.0
    %752 = vmatpush1.msra.mxu0 0.0
    %753 = vmatprep.subr.mxu0 0.0
    %754 = vmatpush1.msra.mxu0 0.0
    %755 = vmatprep.subr.mxu0 0.0
    %756 = vmatpush1.msra.mxu0 0.0
    %757 = vmatprep.subr.mxu0 0.0
    %758 = vmatpush1.msra.mxu0 0.0
    %759 = vmatprep.subr.mxu0 0.0
    %760 = vmatpush1.msra.mxu0 0.0
    %761 = vmatprep.mubr.f32.mxu0 0.0
    %v762 = vand.u32 %v537, 4294901760
    %v763 = vsub.f32 %v537, %v762
    %764 = vmatmul.mubr.f32.gmra.mrb[0].mxu0 %v763
    %v765 = vpop.f32.mrb[0].mxu0
    %v766 = vadd.f32 %v692, %v765
    %v767 = vpop.f32.mrb[0].mxu0
    %768 = vdwg.mxu0
    %769 = vmatprep.subr.mxu0 0.0
    %v770 = vand.u32 %v541, 4294901760
    %771 = vmatpush1.msra.mxu0 %v770
    %772 = vmatprep.subr.mxu0 0.0
    %773 = vmatpush1.msra.mxu0 0.0
    %774 = vmatprep.subr.mxu0 0.0
    %775 = vmatpush1.msra.mxu0 0.0
    %776 = vmatprep.subr.mxu0 0.0
    %777 = vmatpush1.msra.mxu0 0.0
    %778 = vmatprep.subr.mxu0 0.0
    %779 = vmatpush1.msra.mxu0 0.0
    %780 = vmatprep.subr.mxu0 0.0
    %781 = vmatpush1.msra.mxu0 0.0
    %782 = vmatprep.subr.mxu0 0.0
    %783 = vmatpush1.msra.mxu0 0.0
    %784 = vmatprep.subr.mxu0 0.0
    %785 = vmatpush1.msra.mxu0 0.0
    %786 = vmatprep.subr.mxu0 0.0
    %787 = vmatpush1.msra.mxu0 0.0
    %788 = vmatprep.subr.mxu0 0.0
    %789 = vmatpush1.msra.mxu0 0.0
    %790 = vmatprep.subr.mxu0 0.0
    %791 = vmatpush1.msra.mxu0 0.0
    %792 = vmatprep.subr.mxu0 0.0
    %793 = vmatpush1.msra.mxu0 0.0
    %794 = vmatprep.subr.mxu0 0.0
    %795 = vmatpush1.msra.mxu0 0.0
    %796 = vmatprep.subr.mxu0 0.0
    %797 = vmatpush1.msra.mxu0 0.0
    %798 = vmatprep.subr.mxu0 0.0
    %799 = vmatpush1.msra.mxu0 0.0
    %800 = vmatprep.subr.mxu0 0.0
    %801 = vmatpush1.msra.mxu0 0.0
    %802 = vmatprep.subr.mxu0 0.0
    %803 = vmatpush1.msra.mxu0 0.0
    %804 = vmatprep.subr.mxu0 0.0
    %805 = vmatpush1.msra.mxu0 0.0
    %806 = vmatprep.subr.mxu0 0.0
    %807 = vmatpush1.msra.mxu0 0.0
    %808 = vmatprep.subr.mxu0 0.0
    %809 = vmatpush1.msra.mxu0 0.0
    %810 = vmatprep.subr.mxu0 0.0
    %811 = vmatpush1.msra.mxu0 0.0
    %812 = vmatprep.subr.mxu0 0.0
    %813 = vmatpush1.msra.mxu0 0.0
    %814 = vmatprep.subr.mxu0 0.0
    %815 = vmatpush1.msra.mxu0 0.0
    %816 = vmatprep.subr.mxu0 0.0
    %817 = vmatpush1.msra.mxu0 0.0
    %818 = vmatprep.subr.mxu0 0.0
    %819 = vmatpush1.msra.mxu0 0.0
    %820 = vmatprep.subr.mxu0 0.0
    %821 = vmatpush1.msra.mxu0 0.0
    %822 = vmatprep.subr.mxu0 0.0
    %823 = vmatpush1.msra.mxu0 0.0
    %824 = vmatprep.subr.mxu0 0.0
    %825 = vmatpush1.msra.mxu0 0.0
    %826 = vmatprep.subr.mxu0 0.0
    %827 = vmatpush1.msra.mxu0 0.0
    %828 = vmatprep.subr.mxu0 0.0
    %829 = vmatpush1.msra.mxu0 0.0
    %830 = vmatprep.subr.mxu0 0.0
    %831 = vmatpush1.msra.mxu0 0.0
    %832 = vmatprep.subr.mxu0 0.0
    %833 = vmatpush1.msra.mxu0 0.0
    %834 = vmatprep.mubr.f32.mxu0 0.0
    %v835 = vand.u32 %v537, 4294901760
    %v836 = vsub.f32 %v537, %v835
    %v837 = vand.u32 %v836, 4294901760
    %838 = vmatmul.mubr.f32.gmra.mrb[0].mxu0 %v837
    %v839 = vpop.f32.mrb[0].mxu0
    %v840 = vadd.f32 %v766, %v839
    %v841 = vpop.f32.mrb[0].mxu0
    %842 = vdwg.mxu0
    %843 = vmatprep.subr.mxu0 0.0
    %v844 = vand.u32 %v541, 4294901760
    %v845 = vsub.f32 %v541, %v844
    %v846 = vand.u32 %v845, 4294901760
    %847 = vmatpush1.msra.mxu0 %v846
    %848 = vmatprep.subr.mxu0 0.0
    %849 = vmatpush1.msra.mxu0 0.0
    %850 = vmatprep.subr.mxu0 0.0
    %851 = vmatpush1.msra.mxu0 0.0
    %852 = vmatprep.subr.mxu0 0.0
    %853 = vmatpush1.msra.mxu0 0.0
    %854 = vmatprep.subr.mxu0 0.0
    %855 = vmatpush1.msra.mxu0 0.0
    %856 = vmatprep.subr.mxu0 0.0
    %857 = vmatpush1.msra.mxu0 0.0
    %858 = vmatprep.subr.mxu0 0.0
    %859 = vmatpush1.msra.mxu0 0.0
    %860 = vmatprep.subr.mxu0 0.0
    %861 = vmatpush1.msra.mxu0 0.0
    %862 = vmatprep.subr.mxu0 0.0
    %863 = vmatpush1.msra.mxu0 0.0
    %864 = vmatprep.subr.mxu0 0.0
    %865 = vmatpush1.msra.mxu0 0.0
    %866 = vmatprep.subr.mxu0 0.0
    %867 = vmatpush1.msra.mxu0 0.0
    %868 = vmatprep.subr.mxu0 0.0
    %869 = vmatpush1.msra.mxu0 0.0
    %870 = vmatprep.subr.mxu0 0.0
    %871 = vmatpush1.msra.mxu0 0.0
    %872 = vmatprep.subr.mxu0 0.0
    %873 = vmatpush1.msra.mxu0 0.0
    %874 = vmatprep.subr.mxu0 0.0
    %875 = vmatpush1.msra.mxu0 0.0
    %876 = vmatprep.subr.mxu0 0.0
    %877 = vmatpush1.msra.mxu0 0.0
    %878 = vmatprep.subr.mxu0 0.0
    %879 = vmatpush1.msra.mxu0 0.0
    %880 = vmatprep.subr.mxu0 0.0
    %881 = vmatpush1.msra.mxu0 0.0
    %882 = vmatprep.subr.mxu0 0.0
    %883 = vmatpush1.msra.mxu0 0.0
    %884 = vmatprep.subr.mxu0 0.0
    %885 = vmatpush1.msra.mxu0 0.0
    %886 = vmatprep.subr.mxu0 0.0
    %887 = vmatpush1.msra.mxu0 0.0
    %888 = vmatprep.subr.mxu0 0.0
    %889 = vmatpush1.msra.mxu0 0.0
    %890 = vmatprep.subr.mxu0 0.0
    %891 = vmatpush1.msra.mxu0 0.0
    %892 = vmatprep.subr.mxu0 0.0
    %893 = vmatpush1.msra.mxu0 0.0
    %894 = vmatprep.subr.mxu0 0.0
    %895 = vmatpush1.msra.mxu0 0.0
    %896 = vmatprep.subr.mxu0 0.0
    %897 = vmatpush1.msra.mxu0 0.0
    %898 = vmatprep.subr.mxu0 0.0
    %899 = vmatpush1.msra.mxu0 0.0
    %900 = vmatprep.subr.mxu0 0.0
    %901 = vmatpush1.msra.mxu0 0.0
    %902 = vmatprep.subr.mxu0 0.0
    %903 = vmatpush1.msra.mxu0 0.0
    %904 = vmatprep.subr.mxu0 0.0
    %905 = vmatpush1.msra.mxu0 0.0
    %906 = vmatprep.subr.mxu0 0.0
    %907 = vmatpush1.msra.mxu0 0.0
    %908 = vmatprep.subr.mxu0 0.0
    %909 = vmatpush1.msra.mxu0 0.0
    %910 = vmatprep.mubr.f32.mxu0 0.0
    %v911 = vand.u32 %v537, 4294901760
    %912 = vmatmul.mubr.f32.gmra.mrb[0].mxu0 %v911
    %v913 = vpop.f32.mrb[0].mxu0
    %v914 = vadd.f32 %v840, %v913
    %v915 = vpop.f32.mrb[0].mxu0
    %916 = vdwg.mxu0
    %917 = vmatprep.subr.mxu0 0.0
    %v918 = vand.u32 %v541, 4294901760
    %919 = vmatpush1.msra.mxu0 %v918
    %920 = vmatprep.subr.mxu0 0.0
    %921 = vmatpush1.msra.mxu0 0.0
    %922 = vmatprep.subr.mxu0 0.0
    %923 = vmatpush1.msra.mxu0 0.0
    %924 = vmatprep.subr.mxu0 0.0
    %925 = vmatpush1.msra.mxu0 0.0
    %926 = vmatprep.subr.mxu0 0.0
    %927 = vmatpush1.msra.mxu0 0.0
    %928 = vmatprep.subr.mxu0 0.0
    %929 = vmatpush1.msra.mxu0 0.0
    %930 = vmatprep.subr.mxu0 0.0
    %931 = vmatpush1.msra.mxu0 0.0
    %932 = vmatprep.subr.mxu0 0.0
    %933 = vmatpush1.msra.mxu0 0.0
    %934 = vmatprep.subr.mxu0 0.0
    %935 = vmatpush1.msra.mxu0 0.0
    %936 = vmatprep.subr.mxu0 0.0
    %937 = vmatpush1.msra.mxu0 0.0
    %938 = vmatprep.subr.mxu0 0.0
    %939 = vmatpush1.msra.mxu0 0.0
    %940 = vmatprep.subr.mxu0 0.0
    %941 = vmatpush1.msra.mxu0 0.0
    %942 = vmatprep.subr.mxu0 0.0
    %943 = vmatpush1.msra.mxu0 0.0
    %944 = vmatprep.subr.mxu0 0.0
    %945 = vmatpush1.msra.mxu0 0.0
    %946 = vmatprep.subr.mxu0 0.0
    %947 = vmatpush1.msra.mxu0 0.0
    %948 = vmatprep.subr.mxu0 0.0
    %949 = vmatpush1.msra.mxu0 0.0
    %950 = vmatprep.subr.mxu0 0.0
    %951 = vmatpush1.msra.mxu0 0.0
    %952 = vmatprep.subr.mxu0 0.0
    %953 = vmatpush1.msra.mxu0 0.0
    %954 = vmatprep.subr.mxu0 0.0
    %955 = vmatpush1.msra.mxu0 0.0
    %956 = vmatprep.subr.mxu0 0.0
    %957 = vmatpush1.msra.mxu0 0.0
    %958 = vmatprep.subr.mxu0 0.0
    %959 = vmatpush1.msra.mxu0 0.0
    %960 = vmatprep.subr.mxu0 0.0
    %961 = vmatpush1.msra.mxu0 0.0
    %962 = vmatprep.subr.mxu0 0.0
    %963 = vmatpush1.msra.mxu0 0.0
    %964 = vmatprep.subr.mxu0 0.0
    %965 = vmatpush1.msra.mxu0 0.0
    %966 = vmatprep.subr.mxu0 0.0
    %967 = vmatpush1.msra.mxu0 0.0
    %968 = vmatprep.subr.mxu0 0.0
    %969 = vmatpush1.msra.mxu0 0.0
    %970 = vmatprep.subr.mxu0 0.0
    %971 = vmatpush1.msra.mxu0 0.0
    %972 = vmatprep.subr.mxu0 0.0
    %973 = vmatpush1.msra.mxu0 0.0
    %974 = vmatprep.subr.mxu0 0.0
    %975 = vmatpush1.msra.mxu0 0.0
    %976 = vmatprep.subr.mxu0 0.0
    %977 = vmatpush1.msra.mxu0 0.0
    %978 = vmatprep.subr.mxu0 0.0
    %979 = vmatpush1.msra.mxu0 0.0
    %980 = vmatprep.subr.mxu0 0.0
    %981 = vmatpush1.msra.mxu0 0.0
    %982 = vmatprep.mubr.f32.mxu0 0.0
    %v983 = vand.u32 %v537, 4294901760
    %984 = vmatmul.mubr.f32.gmra.mrb[0].mxu0 %v983
    %v985 = vpop.f32.mrb[0].mxu0
    %v986 = vadd.f32 %v914, %v985
    %v987 = vpop.f32.mrb[0].mxu0
    %988 = vdwg.mxu0
    %v989 = vxor.u32 %v986, 2147483648
    %v990 = vmul.f32 %v989, 1.442695
    %v991 = vpow.pop %v990
    %v992 = vadd.f32 %v991, 1.0
    %v993 = vrcp.pop %v992
    %v994 = vmul.f32 1.0, %v993
    %v995 = vlaneseq
    %v996 = vshrl.u32 %v995, 7
    %v997 = vsub.s32 0, %v996
    %v998 = vrot.slane %v994, %v997
    %1000 = vbcast.lane.b32.xlu0 %v998, 256
    %v1001 = vpop.permute.xlu0 %1000
    %v1002 = vlaneseq
    %v1003 = vshrl.u32 %v1002, 7
    %v1004 = vsub.s32 1, %v1003
    %v1005 = vrot.slane %v994, %v1004
    %1007 = vbcast.lane.b32.xlu0 %v1005, 256
    %v1008 = vpop.permute.xlu0 %1007
    %v1009 = vmul.f32 %v35, %v1001
    %v1010 = vmul.f32 %v36, %v1001
    %v1011 = vmul.f32 %v37, %v1001
    %v1012 = vmul.f32 %v38, %v1001
    %v1013 = vmul.f32 %v39, %v1008
    %v1014 = vmul.f32 %v40, %v1008
    %v1015 = vmul.f32 %v41, %v1008
    %v1016 = vmul.f32 %v42, %v1008
    %1017 = vst [vmem:[#allocation5] sm:$0xff] %v1009
    %1018 = vst [vmem:[#allocation5 + $0x8] sm:$0xff] %v1010
    %1019 = vst [vmem:[#allocation5 + $0x10] sm:$0xff] %v1011
    %1020 = vst [vmem:[#allocation5 + $0x18] sm:$0xff] %v1012
    %1021 = vst [vmem:[#allocation5 + $0x20] sm:$0xff] %v1013
    %1022 = vst [vmem:[#allocation5 + $0x28] sm:$0xff] %v1014
    %1023 = vst [vmem:[#allocation5 + $0x30] sm:$0xff] %v1015
    %1024 = vst [vmem:[#allocation5 + $0x38] sm:$0xff] %v1016
    // Predicated region
    $region26: #{tpu_custom_call.1} parent=1 // pred_check
      _
    $region27: #{tpu_custom_call.1} parent=1 // pred_check_branch
      %1026 = sbr.rel (0) target = $region29
    $region28: #{tpu_custom_call.1} parent=1 // pred_region
      %s1028 = ssub.s32 1024, 1024
      %1029 = vsyncadd [#allocation4], %s1028
      %s1030 = sshll.u32 [#allocation5], 4
      %s1031 = int_to_ptr.vmem [resolvable:$true] %s1030
      %1036 = dma.vmem_to_hbm [thread:$0]  %s1031, 1024, %s5, [#allocation4], 512, 512, 32
    $region29: #{tpu_custom_call.1} parent=1 // pred_fallthru
      _
    // Predicated region
    $region30: #{tpu_custom_call.1} parent=1 // pred_check
      _
    $region31: #{tpu_custom_call.1} parent=1 // pred_check_branch
      %1038 = sbr.rel (0) target = $region33
    $region32: #{tpu_custom_call.1} parent=1 // pred_region
      %1039 = dma.done [#allocation4], 1024
    $region33: #{tpu_custom_call.1} parent=1 // pred_fallthru
      _
    %1040 = vsyncpa [#allocation3], 1
    %1041 = vsyncpa [#allocation4], 1

</llo_original>
